<compile_context>
chip_gen: v7x
topology: tpu7x:2x2x1
jax: 0.10.0
libtpu: 0.0.40
codegen_flags: <defaults>
</compile_context>

<pallas_src>
import jax
import jax.numpy as jnp
from jax.experimental import pallas as pl
from jax.experimental.pallas import tpu as pltpu


def _gaussian_kernel(x_ref, w_ref, b_ref, o_ref):
    # One fused MXU matmul for [mean | logvar]; f32 accumulation, f32 bias add,
    # then a single cast on the way out. Output block is lane-dense.
    y = jnp.dot(x_ref[...], w_ref[...], preferred_element_type=jnp.float32)
    o_ref[...] = (y + b_ref[...].astype(jnp.float32)).astype(o_ref.dtype)


def _round_up(v, m):
    return ((v + m - 1) // m) * m


def gaussian_forward(x, w_mean, b_mean, w_logvar, b_logvar, *, tm=256):
    """x: (*, D); w_*: (D, L); b_*: (L,). Returns (mean, logvar), each (*, L)."""
    orig_shape = x.shape
    D = orig_shape[-1]
    L = w_mean.shape[-1]
    out_dtype = x.dtype

    x2 = x.reshape(-1, D)
    M = x2.shape[0]

    # ---- Fuse the two linears into one (D, 2L) matmul; pad lanes to 128 ----
    w = jnp.concatenate([w_mean, w_logvar], axis=-1)   # (D, 2L)
    b = jnp.concatenate([b_mean, b_logvar], axis=-1)   # (2L,)
    N = 2 * L
    N_pad = _round_up(N, 128)
    if N_pad != N:
        w = jnp.pad(w, ((0, 0), (0, N_pad - N)))
        b = jnp.pad(b, (0, N_pad - N))
    b2 = b.reshape(1, N_pad)

    # ---- Row tiling: large tiles amortize per-step overhead; pad M up ----
    tm_eff = max(8, min(tm, _round_up(M, 8)))
    tm_eff = _round_up(tm_eff, 8)
    M_pad = _round_up(M, tm_eff)
    if M_pad != M:
        x2 = jnp.pad(x2, ((0, M_pad - M), (0, 0)))
    grid = (M_pad // tm_eff,)

    # ---- VMEM budget: only raise the scoped limit when actually needed ----
    x_isz = jnp.dtype(x2.dtype).itemsize
    w_isz = jnp.dtype(w.dtype).itemsize
    o_isz = jnp.dtype(out_dtype).itemsize
    vmem_needed = (
        2 * tm_eff * D * x_isz        # x tile, double-buffered
        + 2 * tm_eff * N_pad * o_isz  # output tile, double-buffered
        + 2 * D * N_pad * w_isz       # resident fused weight (2 bufs)
        + 2 * N_pad * w_isz           # resident fused bias
    )
    default_scoped = 32 * 1024 * 1024
    vmem_limit = None
    if (vmem_needed * 5) // 4 > default_scoped:
        # Cap at 64 MiB so this remains valid on v7x (64 MiB physical VMEM).
        vmem_limit = min((vmem_needed * 5) // 4, 64 * 1024 * 1024)

    cost = pl.CostEstimate(
        flops=2 * M * D * N,
        transcendentals=0,
        bytes_accessed=(M * D * x_isz + D * N * w_isz + N * w_isz
                        + 2 * M * L * o_isz),
    )

    out = pl.pallas_call(
        _gaussian_kernel,
        out_shape=jax.ShapeDtypeStruct((M_pad, N_pad), out_dtype),
        grid_spec=pltpu.PrefetchScalarGridSpec(
            num_scalar_prefetch=0,
            grid=grid,
            in_specs=[
                pl.BlockSpec((tm_eff, D), lambda i: (i, 0)),   # x row tile
                pl.BlockSpec((D, N_pad), lambda i: (0, 0)),    # fused W (resident)
                pl.BlockSpec((1, N_pad), lambda i: (0, 0)),    # fused bias
            ],
            out_specs=pl.BlockSpec((tm_eff, N_pad), lambda i: (i, 0)),
        ),
        compiler_params=pltpu.CompilerParams(
            dimension_semantics=("parallel",),
            vmem_limit_bytes=vmem_limit,
        ),
        cost_estimate=cost,
    )(x2, w, b2)

    out_shape = orig_shape[:-1] + (L,)
    mean = out[:M, :L].reshape(out_shape)
    logvar = out[:M, L:N].reshape(out_shape)
    return mean, logvar


def init_gaussian_params(key, d_model, latent_size, dtype=jnp.float32):
    """Deterministic init mimicking nn.Linear default (uniform +-1/sqrt(fan_in))."""
    k1, k2, k3, k4 = jax.random.split(key, 4)
    bound = 1.0 / jnp.sqrt(d_model)
    w_mean = jax.random.uniform(k1, (d_model, latent_size), dtype, -bound, bound)
    b_mean = jax.random.uniform(k2, (latent_size,), dtype, -bound, bound)
    w_logvar = jax.random.uniform(k3, (d_model, latent_size), dtype, -bound, bound)
    b_logvar = jax.random.uniform(k4, (latent_size,), dtype, -bound, bound)
    return w_mean, b_mean, w_logvar, b_logvar


if __name__ == "__main__":
    key = jax.random.PRNGKey(0)
    kx, kp = jax.random.split(key)

    batch, seq, d_model, latent_size = 2, 8, 32, 16
    x = jax.random.normal(kx, (batch, seq, d_model), dtype=jnp.float32)
    w_mean, b_mean, w_logvar, b_logvar = init_gaussian_params(
        kp, d_model, latent_size)

    mean, logvar = gaussian_forward(x, w_mean, b_mean, w_logvar, b_logvar)
    jax.block_until_ready((mean, logvar))

    # Reference check in plain JAX.
    ref_mean = x @ w_mean + b_mean
    ref_logvar = x @ w_logvar + b_logvar
    assert mean.shape == (batch, seq, latent_size)
    assert logvar.shape == (batch, seq, latent_size)
    assert jnp.allclose(mean, ref_mean, atol=1e-5, rtol=1e-5)
    assert jnp.allclose(logvar, ref_logvar, atol=1e-5, rtol=1e-5)

    # Also exercise a non-tile-divisible, larger batch path (padding logic).
    x_big = jax.random.normal(kx, (3, 37, d_model), dtype=jnp.float32)
    m2, lv2 = gaussian_forward(x_big, w_mean, b_mean, w_logvar, b_logvar)
    jax.block_until_ready((m2, lv2))
    assert jnp.allclose(m2, x_big @ w_mean + b_mean, atol=1e-5, rtol=1e-5)
    assert jnp.allclose(lv2, x_big @ w_logvar + b_logvar, atol=1e-5, rtol=1e-5)

    print("KERNEL_OK")
</pallas_src>

<mosaic_0001>
module attributes {stable_mosaic.version = 11 : i64} {
  func.func @_gaussian_kernel(%arg0: i32, %arg1: memref<16x32xf32, #tpu.memory_space<vmem>>, %arg2: memref<32x128xf32, #tpu.memory_space<vmem>>, %arg3: memref<1x128xf32, #tpu.memory_space<vmem>>, %arg4: memref<16x128xf32, #tpu.memory_space<vmem>>) attributes {dimension_semantics = [#tpu.dimension_semantics<parallel>], iteration_bounds = array<i64: 1>, scalar_prefetch = 0 : i64, scratch_operands = 0 : i64, tpu.core_type = #tpu.core_type<tc>, window_params = [{transform_indices = @transform_0, window_bounds = array<i64: 16, 32>}, {pipeline_mode = #tpu.pipeline_mode<synchronous>, transform_indices = @transform_1, window_bounds = array<i64: 32, 128>}, {pipeline_mode = #tpu.pipeline_mode<synchronous>, transform_indices = @transform_2, window_bounds = array<i64: 1, 128>}, {transform_indices = @transform_3, window_bounds = array<i64: 16, 128>}]} {
    %c0 = arith.constant 0 : index
    %c0_0 = arith.constant 0 : index
    %0 = vector.load %arg1[%c0, %c0_0] : memref<16x32xf32, #tpu.memory_space<vmem>>, vector<16x32xf32>
    %c0_1 = arith.constant 0 : index
    %c0_2 = arith.constant 0 : index
    %1 = vector.load %arg2[%c0_1, %c0_2] : memref<32x128xf32, #tpu.memory_space<vmem>>, vector<32x128xf32>
    %cst = arith.constant dense<0.000000e+00> : vector<16x128xf32>
    %2 = tpu.matmul %0, %1, %cst {dimension_numbers = #tpu.dot_dimension_numbers<[1], [0], [0], [1], [0, 0, 1, 1], [], []>} : vector<16x32xf32>, vector<32x128xf32>, vector<16x128xf32> -> vector<16x128xf32>
    %c0_3 = arith.constant 0 : index
    %c0_4 = arith.constant 0 : index
    %3 = vector.load %arg3[%c0_3, %c0_4] : memref<1x128xf32, #tpu.memory_space<vmem>>, vector<1x128xf32>
    %4 = vector.broadcast %3 : vector<1x128xf32> to vector<16x128xf32>
    %5 = arith.addf %2, %4 : vector<16x128xf32>
    %c0_5 = arith.constant 0 : index
    %c0_6 = arith.constant 0 : index
    %6 = vector.load %arg4[%c0_5, %c0_6] : memref<16x128xf32, #tpu.memory_space<vmem>>, vector<16x128xf32>
    tpu.vector_store %arg4[%c0_5, %c0_6], %5 {strides = array<i32>} : memref<16x128xf32, #tpu.memory_space<vmem>>, vector<16x128xf32>,
    return
  }
  func.func @transform_0(%arg0: i32) -> (i32, i32) {
    %c0_i32 = arith.constant 0 : i32
    %c0_i32_0 = arith.constant 0 : i32
    return %arg0, %c0_i32 : i32, i32
  }
  func.func @transform_1(%arg0: i32) -> (i32, i32) {
    %c0_i32 = arith.constant 0 : i32
    %c0_i32_0 = arith.constant 0 : i32
    %c0_i32_1 = arith.constant 0 : i32
    return %c0_i32, %c0_i32_0 : i32, i32
  }
  func.func @transform_2(%arg0: i32) -> (i32, i32) {
    %c0_i32 = arith.constant 0 : i32
    %c0_i32_0 = arith.constant 0 : i32
    %c0_i32_1 = arith.constant 0 : i32
    return %c0_i32, %c0_i32_0 : i32, i32
  }
  func.func @transform_3(%arg0: i32) -> (i32, i32) {
    %c0_i32 = arith.constant 0 : i32
    %c0_i32_0 = arith.constant 0 : i32
    return %arg0, %c0_i32 : i32, i32
  }
}

</mosaic_0001>

<llo_original>
// kernel: tpu_custom_call.1
$region0: #{tpu_custom_call.1}
  #allocation0 [shape = 'u32[]', space=smem, size = 0x4, offset = 0x4, fixed_abs, tag = 'smem constant byte address 0x4 - core index']
  #allocation1 [shape = 'u32[144,128]{1,0:T(1,128)}', space=vmem, size = 0x12000, scoped, tag = 'internal scratch']
  %s0 = inlined_call_operand.hbm [shape: f32[16,32], index: 0, kind: input, shape index: {}]
  %s1 = inlined_call_operand.hbm [shape: f32[32,128], index: 1, kind: input, shape index: {}]
  %s2 = inlined_call_operand.vmem [shape: f32[1,128], index: 2, kind: input, shape index: {}]
  %s3 = inlined_call_operand.hbm [shape: f32[16,128], index: 3, kind: output, shape index: {}]
  %s4 = sld [smem:[#allocation0]]
  $region30: #{tpu_custom_call.1} parent=0
    _
  %s6 = ssub.s32 1, %s4
  %s7 = scalar_select 0, %s6, %s4
  $region1: #{tpu_custom_call.1} parent=0
    #allocation2 [shape = 'u8[8192]{0}', space=vmem, size = 0x2000, scoped, tag = 'input window, operand 0, single buffered']
    #allocation3 [shape = 's32[1]{0}', space=sflag, size = 0x4, scoped, tag = 'scoped memory for tpu_custom_call.1']
    #allocation4 [shape = 's32[1]{0}', space=sflag, size = 0x4, scoped, tag = 'scoped memory for tpu_custom_call.1']
    #allocation5 [shape = 'u8[16384]{0}', space=vmem, size = 0x4000, scoped, tag = 'input window, operand 1, single buffered']
    #allocation6 [shape = 's32[1]{0}', space=sflag, size = 0x4, scoped, tag = 'scoped memory for tpu_custom_call.1']
    #allocation7 [shape = 'u8[8192]{0}', space=vmem, size = 0x2000, scoped, tag = 'output window, operand 0, single buffered']
    %8 = vsyncpa [#allocation3], 0
    %9 = vsyncpa [#allocation6], 0
    %10 = vsyncpa [#allocation4], 0
    // Predicated region
    $region2: #{tpu_custom_call.1} parent=1 // pred_check
      _
    $region3: #{tpu_custom_call.1} parent=1 // pred_check_branch
      %12 = sbr.rel (0) target = $region5
    $region4: #{tpu_custom_call.1} parent=1 // pred_region
      %s14 = ssub.s32 256, 256
      %15 = vsyncadd [#allocation3], %s14
      %s16 = sshll.u32 [#allocation2], 4
      %s17 = int_to_ptr.vmem [resolvable:$true] %s16
      %22 = dma.hbm_to_vmem [thread:$0]  %s0, 256, %s17, [#allocation3], 128, 128, 8
    $region5: #{tpu_custom_call.1} parent=1 // pred_fallthru
      _
    // Predicated region
    $region6: #{tpu_custom_call.1} parent=1 // pred_check
      _
    $region7: #{tpu_custom_call.1} parent=1 // pred_check_branch
      %24 = sbr.rel (0) target = $region9
    $region8: #{tpu_custom_call.1} parent=1 // pred_region
      %s26 = ssub.s32 512, 512
      %27 = vsyncadd [#allocation6], %s26
      %s28 = sshll.u32 [#allocation5], 4
      %s29 = int_to_ptr.vmem [resolvable:$true] %s28
      %34 = dma.hbm_to_vmem [thread:$0]  %s1, 512, %s29, [#allocation6], 128, 128, 8
    $region9: #{tpu_custom_call.1} parent=1 // pred_fallthru
      _
    // Predicated region
    $region10: #{tpu_custom_call.1} parent=1 // pred_check
      _
    $region11: #{tpu_custom_call.1} parent=1 // pred_check_branch
      %36 = sbr.rel (0) target = $region13
    $region12: #{tpu_custom_call.1} parent=1 // pred_region
      _
    $region13: #{tpu_custom_call.1} parent=1 // pred_fallthru
      _
    // Predicated region
    $region14: #{tpu_custom_call.1} parent=1 // pred_check
      _
    $region15: #{tpu_custom_call.1} parent=1 // pred_check_branch
      %38 = sbr.rel (0) target = $region17
    $region16: #{tpu_custom_call.1} parent=1 // pred_region
      %39 = dma.done [#allocation3], 256
    $region17: #{tpu_custom_call.1} parent=1 // pred_fallthru
      _
    // Predicated region
    $region18: #{tpu_custom_call.1} parent=1 // pred_check
      _
    $region19: #{tpu_custom_call.1} parent=1 // pred_check_branch
      %41 = sbr.rel (0) target = $region21
    $region20: #{tpu_custom_call.1} parent=1 // pred_region
      %42 = dma.done [#allocation6], 512
    $region21: #{tpu_custom_call.1} parent=1 // pred_fallthru
      _
    %v43 = vld [vmem:[#allocation2] sm:$0xff]
    %v44 = vld [vmem:[#allocation2 + $0x8] sm:$0xff]
    %v45 = vld [vmem:[#allocation5] sm:$0xff]
    %v46 = vld [vmem:[#allocation5 + $0x8] sm:$0xff]
    %v47 = vld [vmem:[#allocation5 + $0x10] sm:$0xff]
    %v48 = vld [vmem:[#allocation5 + $0x18] sm:$0xff]
    %v49 = vld [vmem:[%s2] sm:$0x1]
    %v51 = vlaneseq
    %v52 = vshrl.u32 %v51, 7
    %v53 = vsub.s32 0, %v52
    %v54 = vrot.slane %v49, %v53
    %vm56 = vcmask 261120
    %v58 = vsel %vm56, %v43, 0
    %v61 = vsel %vm56, %v44, 0
    %63 = vmatprep.subr.mxu0 0.0
    %64 = vmatpush1.msra.mxu0 %v45
    %65 = vmatprep.subr.mxu0 0.0
    %66 = vmatpush1.msra.mxu0 %v46
    %67 = vmatprep.subr.mxu0 0.0
    %68 = vmatpush1.msra.mxu0 %v47
    %69 = vmatprep.subr.mxu0 0.0
    %70 = vmatpush1.msra.mxu0 %v48
    %71 = vmatprep.subr.mxu0 0.0
    %72 = vmatpush1.msra.mxu0 0.0
    %73 = vmatprep.subr.mxu0 0.0
    %74 = vmatpush1.msra.mxu0 0.0
    %75 = vmatprep.subr.mxu0 0.0
    %76 = vmatpush1.msra.mxu0 0.0
    %77 = vmatprep.subr.mxu0 0.0
    %78 = vmatpush1.msra.mxu0 0.0
    %79 = vmatprep.subr.mxu0 0.0
    %80 = vmatpush1.msra.mxu0 0.0
    %81 = vmatprep.subr.mxu0 0.0
    %82 = vmatpush1.msra.mxu0 0.0
    %83 = vmatprep.subr.mxu0 0.0
    %84 = vmatpush1.msra.mxu0 0.0
    %85 = vmatprep.subr.mxu0 0.0
    %86 = vmatpush1.msra.mxu0 0.0
    %87 = vmatprep.subr.mxu0 0.0
    %88 = vmatpush1.msra.mxu0 0.0
    %89 = vmatprep.subr.mxu0 0.0
    %90 = vmatpush1.msra.mxu0 0.0
    %91 = vmatprep.subr.mxu0 0.0
    %92 = vmatpush1.msra.mxu0 0.0
    %93 = vmatprep.subr.mxu0 0.0
    %94 = vmatpush1.msra.mxu0 0.0
    %95 = vmatprep.subr.mxu0 0.0
    %96 = vmatpush1.msra.mxu0 0.0
    %97 = vmatprep.subr.mxu0 0.0
    %98 = vmatpush1.msra.mxu0 0.0
    %99 = vmatprep.subr.mxu0 0.0
    %100 = vmatpush1.msra.mxu0 0.0
    %101 = vmatprep.subr.mxu0 0.0
    %102 = vmatpush1.msra.mxu0 0.0
    %103 = vmatprep.subr.mxu0 0.0
    %104 = vmatpush1.msra.mxu0 0.0
    %105 = vmatprep.subr.mxu0 0.0
    %106 = vmatpush1.msra.mxu0 0.0
    %107 = vmatprep.subr.mxu0 0.0
    %108 = vmatpush1.msra.mxu0 0.0
    %109 = vmatprep.subr.mxu0 0.0
    %110 = vmatpush1.msra.mxu0 0.0
    %111 = vmatprep.subr.mxu0 0.0
    %112 = vmatpush1.msra.mxu0 0.0
    %113 = vmatprep.subr.mxu0 0.0
    %114 = vmatpush1.msra.mxu0 0.0
    %115 = vmatprep.subr.mxu0 0.0
    %116 = vmatpush1.msra.mxu0 0.0
    %117 = vmatprep.subr.mxu0 0.0
    %118 = vmatpush1.msra.mxu0 0.0
    %119 = vmatprep.subr.mxu0 0.0
    %120 = vmatpush1.msra.mxu0 0.0
    %121 = vmatprep.subr.mxu0 0.0
    %122 = vmatpush1.msra.mxu0 0.0
    %123 = vmatprep.subr.mxu0 0.0
    %124 = vmatpush1.msra.mxu0 0.0
    %125 = vmatprep.subr.mxu0 0.0
    %126 = vmatpush1.msra.mxu0 0.0
    %127 = vmatprep.mubr.f32.mxu0 0.0
    %128 = vmatmul.mubr.f32.gmra.mrb[0].mxu0 %v58
    %v129 = vpop.f32.mrb[0].mxu0
    %v130 = vadd.f32 %v54, %v129
    %v131 = vpop.f32.mrb[0].mxu0
    %132 = vmatprep.mubr.f32.mxu0 0.0
    %133 = vmatmul.mubr.f32.gmra.mrb[0].mxu0 %v61
    %v134 = vpop.f32.mrb[0].mxu0
    %v135 = vadd.f32 %v54, %v134
    %v136 = vpop.f32.mrb[0].mxu0
    %137 = vdwg.mxu0
    %138 = vst [vmem:[#allocation7] sm:$0xff] %v130
    %139 = vst [vmem:[#allocation7 + $0x8] sm:$0xff] %v135
    // Predicated region
    $region22: #{tpu_custom_call.1} parent=1 // pred_check
      _
    $region23: #{tpu_custom_call.1} parent=1 // pred_check_branch
      %141 = sbr.rel (0) target = $region25
    $region24: #{tpu_custom_call.1} parent=1 // pred_region
      %s143 = ssub.s32 256, 256
      %144 = vsyncadd [#allocation4], %s143
      %s145 = sshll.u32 [#allocation7], 4
      %s146 = int_to_ptr.vmem [resolvable:$true] %s145
      %151 = dma.vmem_to_hbm [thread:$0]  %s146, 256, %s3, [#allocation4], 128, 128, 8
    $region25: #{tpu_custom_call.1} parent=1 // pred_fallthru
      _
    // Predicated region
    $region26: #{tpu_custom_call.1} parent=1 // pred_check
      _
    $region27: #{tpu_custom_call.1} parent=1 // pred_check_branch
      %153 = sbr.rel (0) target = $region29
    $region28: #{tpu_custom_call.1} parent=1 // pred_region
      %154 = dma.done [#allocation4], 256
    $region29: #{tpu_custom_call.1} parent=1 // pred_fallthru
      _
    %155 = vsyncpa [#allocation3], 1
    %156 = vsyncpa [#allocation6], 1
    %157 = vsyncpa [#allocation4], 1

</llo_original>
